<compile_context>
chip_gen: v7x
topology: tpu7x:2x2x1
jax: 0.10.0
libtpu: 0.0.40
codegen_flags: <defaults>
</compile_context>

<pallas_src>
import math

import jax
import jax.numpy as jnp
from jax.experimental import pallas as pl
from jax.experimental.pallas import tpu as pltpu


# ------------------------------ kernel body ------------------------------

def _segment_classifier_kernel(x_ref, w_ref, b_ref, o_ref):
    # x_ref : (1, C_in, S_t, K)   segments on sublanes, within-segment on lanes
    # w_ref : (nc, C_in)          fused weight  (W2 @ W1) / K
    # b_ref : (nc, 1)             fused bias    W2 @ b1 + b2
    # o_ref : (1, nc, S_t)
    x = x_ref[0]                                              # (C_in, S_t, K)

    # AvgPool1d: within-segment sum with the f32 upcast fused into the
    # reduction (avoids materializing an f32 copy of the streamed tile).
    # The 1/K of the average is folded into w_ref in the wrapper.
    pooled = jnp.sum(x, axis=-1, dtype=jnp.float32)           # (C_in, S_t)

    # Fused 1x1 convs: one tiny channel matmul + bias broadcast.
    out = jnp.dot(w_ref[...], pooled,
                  preferred_element_type=jnp.float32) + b_ref[...]  # (nc, S_t)

    o_ref[0] = out.astype(o_ref.dtype)


# ------------------------------ tiling helpers ------------------------------

def _round_up(x, m):
    return (x + m - 1) // m * m


def _divisors(n):
    ds, i = set(), 1
    while i * i <= n:
        if n % i == 0:
            ds.add(i)
            ds.add(n // i)
        i += 1
    return sorted(ds)


def _physical_vmem_bytes():
    """Physical VMEM of the local TPU generation (fallback: 64 MiB = v7x)."""
    try:
        info = pltpu.get_tpu_info()
        v = getattr(info, "vmem_capacity_bytes", None)
        if v:
            return int(v)
    except Exception:
        pass
    return 64 << 20


def _vmem_budgets():
    """(physical VMEM bytes, total VMEM this kernel may use)."""
    phys = _physical_vmem_bytes()
    # ~3/4 of physical, capped at 96 MiB: 48 MiB on v7x, 96 MiB on v5e/v6e.
    total = min((phys * 3) // 4, 96 << 20)
    return phys, total


def _choose_segment_tiling(S, bytes_per_segment, stream_budget,
                           max_segment_tile=None):
    """Return (S_pad, S_t).

    S_pad >= S is the (possibly zero-padded) segment count, S_t divides S_pad.
    Keeps the double-buffered input block 2 * S_t * bytes_per_segment within
    stream_budget, preferring S_t a multiple of 128 (lane-dense output stores),
    and never produces partial boundary blocks.
    """
    max_st = max(1, stream_budget // (2 * bytes_per_segment))
    if max_segment_tile is not None:
        max_st = min(max_st, max_segment_tile)

    lane_divs = [d for d in _divisors(S) if d % 128 == 0 and d <= max_st]
    if lane_divs:
        return S, max(lane_divs)
    if S <= max_st:
        return S, S  # small S: single lane-sparse tile (full-dim block is legal)

    # Large, non-128-aligned S: pad segments up to a multiple of 128 so tiles
    # stay lane-dense and within budget (costs one extra HBM pass; rare path).
    S_pad = _round_up(S, 128)
    lane_divs = [d for d in _divisors(S_pad) if d % 128 == 0 and d <= max_st]
    return S_pad, (max(lane_divs) if lane_divs else 128)


# ------------------------------ public wrapper ------------------------------

def segment_classifier_forward(z, w1, b1, w2, b2, *, avgpool_kernel,
                               stream_dtype=None, max_segment_tile=None):
    """z: (N, C_in, L). Returns (N, num_classes, L // avgpool_kernel) float32.

    stream_dtype: optionally stream the input in a narrower dtype (e.g.
    jnp.bfloat16) -- the kernel is HBM-bound so this is ~2x -- but the cast
    should be produced upstream; a standalone cast pass here would erase the
    win, so this wrapper only casts if the dtype actually differs.
    """
    N, C_in, L = z.shape
    nc = w1.shape[0]
    K = avgpool_kernel
    assert L >= K, "need at least one full avgpool segment"
    S = L // K                      # AvgPool1d floors: drop trailing partial segment
    if L != S * K:
        z = z[:, :, :S * K]

    # Exact fusion of the two 1x1 convs (no nonlinearity between them in the
    # module) with the average-pool 1/K folded into the weight:
    #   y = W2 (W1 (sum/K) + b1) + b2 = ((W2 W1)/K) sum + (W2 b1 + b2)
    w_eff = ((w2 @ w1) / K).astype(jnp.float32)               # (nc, C_in)
    b_eff = (w2 @ b1 + b2).reshape(nc, 1).astype(jnp.float32)  # (nc, 1)

    if stream_dtype is not None and z.dtype != stream_dtype:
        z = z.astype(stream_dtype)

    itemsize = jnp.dtype(z.dtype).itemsize
    # TODO(synk): for K < 128 the K-on-lanes block pads lanes (up to 8x VMEM /
    # wasted vreg lanes in the reduce); a flat-L layout with sublane reduction
    # would avoid it.  The padding IS accounted for in the budget below, and
    # the production K=3840 (= 30 * 128) is fully lane-dense.
    k_lanes = _round_up(K, 128)
    bytes_per_segment = C_in * k_lanes * itemsize

    phys_vmem, total_budget = _vmem_budgets()
    stream_budget = total_budget // 2   # other half: f32 temps, outputs, slack
    S_pad, S_t = _choose_segment_tiling(S, bytes_per_segment, stream_budget,
                                        max_segment_tile)

    # Free view: segments are contiguous in time -> (N, C_in, S, K).
    z4 = z.reshape(N, C_in, S, K)
    if S_pad != S:
        z4 = jnp.pad(z4, ((0, 0), (0, 0), (0, S_pad - S), (0, 0)))
    n_seg_tiles = S_pad // S_t

    # Explicit scoped-VMEM limit derived from the actual block sizes (the
    # 16/32 MiB defaults would reject production-size tiles, esp. on v5e).
    in_block = C_in * S_t * k_lanes * itemsize
    out_block = _round_up(nc, 8) * _round_up(S_t, 128) * 4
    need = (2 * in_block                   # double-buffered input stream
            + 2 * out_block                # double-buffered output
            + C_in * S_t * k_lanes * 4     # headroom for f32 reduce temporaries
            + (2 << 20))                   # weights/bias + misc compiler scratch
    vmem_limit = int(min(max(need, 32 << 20), (phys_vmem * 7) // 8))

    cost = pl.CostEstimate(
        flops=N * C_in * S * K + 2 * N * nc * C_in * S,
        transcendentals=0,
        bytes_accessed=(N * C_in * S * K * itemsize     # stream z once
                        + N * nc * S * 4                # write output
                        + (w_eff.size + b_eff.size) * 4),
    )

    out = pl.pallas_call(
        _segment_classifier_kernel,
        out_shape=jax.ShapeDtypeStruct((N, nc, S_pad), jnp.float32),
        grid_spec=pltpu.PrefetchScalarGridSpec(
            num_scalar_prefetch=0,
            grid=(N, n_seg_tiles),
            in_specs=[
                pl.BlockSpec((1, C_in, S_t, K), lambda n, j: (n, 0, j, 0)),
                pl.BlockSpec((nc, C_in), lambda n, j: (0, 0)),
                pl.BlockSpec((nc, 1), lambda n, j: (0, 0)),
            ],
            out_specs=pl.BlockSpec((1, nc, S_t), lambda n, j: (n, 0, j)),
        ),
        compiler_params=pltpu.CompilerParams(
            dimension_semantics=("parallel", "parallel"),
            vmem_limit_bytes=vmem_limit),
        cost_estimate=cost,
    )(z4, w_eff, b_eff)

    return out[:, :, :S] if S_pad != S else out


# ------------------------------ reference & demo ------------------------------

def _xavier_uniform(key, out_ch, in_ch, ksize):
    # matches nn.init.xavier_uniform_ on a Conv1d weight of shape (out, in, k)
    fan_in = in_ch * ksize
    fan_out = out_ch * ksize
    bound = math.sqrt(6.0 / (fan_in + fan_out))
    return jax.random.uniform(key, (out_ch, in_ch, ksize), jnp.float32,
                              minval=-bound, maxval=bound)


def _reference(z, w1, b1, w2, b2, K):
    # Pure-JAX reference with the same semantics as the PyTorch module:
    # AvgPool1d (floor) then two separate 1x1 convs.
    N, C, L = z.shape
    S = L // K
    pooled = z[:, :, :S * K].reshape(N, C, S, K).mean(-1)
    z1 = jnp.einsum("oc,ncs->nos", w1, pooled) + b1[None, :, None]
    return jnp.einsum("oc,ncs->nos", w2, z1) + b2[None, :, None]


if __name__ == "__main__":
    # Small shapes consistent with the module's forward (production K is 3840;
    # kept small here for the demo).
    num_classes = 5
    conv1d_kernel = 1
    C_in = num_classes + 1
    batch = 2

    key = jax.random.PRNGKey(0)
    kw1, kw2, kb1, kb2, kz = jax.random.split(key, 5)

    w1 = _xavier_uniform(kw1, num_classes, C_in, conv1d_kernel)[:, :, 0]         # (5, 6)
    w2 = _xavier_uniform(kw2, num_classes, num_classes, conv1d_kernel)[:, :, 0]  # (5, 5)
    # Module inits biases to zero; use small nonzero values to exercise the
    # fused-bias path.
    b1 = 0.1 * jax.random.normal(kb1, (num_classes,), jnp.float32)
    b2 = 0.1 * jax.random.normal(kb2, (num_classes,), jnp.float32)

    # (K, segments, extra_tail, max_segment_tile) cases exercising:
    #   1. small S, single lane-sparse tile (S_t == S)
    #   2. 128-aligned S, lane-dense multi-tile grid
    #   3. large non-128-aligned S -> pad-to-128 fallback + output slice
    #   4. L not divisible by K -> PyTorch floor semantics (trailing drop)
    cases = [
        (16, 8, 0, None),
        (16, 256, 0, 128),
        (16, 160, 0, 128),
        (16, 8, 5, None),
    ]

    zkeys = jax.random.split(kz, len(cases))
    for (K, segments, tail, max_tile), zk in zip(cases, zkeys):
        L = K * segments + tail
        z = jax.random.normal(zk, (batch, C_in, L), jnp.float32)

        out = segment_classifier_forward(z, w1, b1, w2, b2,
                                         avgpool_kernel=K,
                                         max_segment_tile=max_tile)
        out = jax.block_until_ready(out)

        ref = _reference(z, w1, b1, w2, b2, K)
        assert out.shape == (batch, num_classes, segments), (out.shape, segments)
        assert jnp.allclose(out, ref, atol=1e-4, rtol=1e-4), (
            f"mismatch vs reference for K={K}, segments={segments}, tail={tail}")

    print("KERNEL_OK")
</pallas_src>

<mosaic_0001>
module attributes {stable_mosaic.version = 11 : i64} {
  func.func @_segment_classifier_kernel(%arg0: i32, %arg1: i32, %arg2: memref<1x6x8x16xf32, #tpu.memory_space<vmem>>, %arg3: memref<5x6xf32, #tpu.memory_space<vmem>>, %arg4: memref<5x1xf32, #tpu.memory_space<vmem>>, %arg5: memref<1x5x8xf32, #tpu.memory_space<vmem>>) attributes {dimension_semantics = [#tpu.dimension_semantics<parallel>, #tpu.dimension_semantics<parallel>], iteration_bounds = array<i64: 2, 1>, scalar_prefetch = 0 : i64, scratch_operands = 0 : i64, tpu.core_type = #tpu.core_type<tc>, window_params = [{transform_indices = @transform_0, window_bounds = array<i64: 1, 6, 8, 16>}, {pipeline_mode = #tpu.pipeline_mode<synchronous>, transform_indices = @transform_1, window_bounds = array<i64: 5, 6>}, {pipeline_mode = #tpu.pipeline_mode<synchronous>, transform_indices = @transform_2, window_bounds = array<i64: 5, 1>}, {transform_indices = @transform_3, window_bounds = array<i64: 1, 5, 8>}]} {
    %c0 = arith.constant 0 : index
    %c0_0 = arith.constant 0 : index
    %c0_1 = arith.constant 0 : index
    %c0_2 = arith.constant 0 : index
    %0 = vector.load %arg2[%c0, %c0_0, %c0_1, %c0_2] : memref<1x6x8x16xf32, #tpu.memory_space<vmem>>, vector<1x6x8x16xf32>
    %1 = vector.shape_cast %0 : vector<1x6x8x16xf32> to vector<6x8x16xf32>
    %cst = arith.constant dense<0.000000e+00> : vector<6x8xf32>
    %2 = vector.multi_reduction <add>, %1, %cst [2] : vector<6x8x16xf32> to vector<6x8xf32>
    %c0_3 = arith.constant 0 : index
    %c0_4 = arith.constant 0 : index
    %3 = vector.load %arg3[%c0_3, %c0_4] : memref<5x6xf32, #tpu.memory_space<vmem>>, vector<5x6xf32>
    %cst_5 = arith.constant dense<0.000000e+00> : vector<5x8xf32>
    %4 = tpu.matmul %3, %2, %cst_5 {dimension_numbers = #tpu.dot_dimension_numbers<[1], [0], [0], [1], [0, 0, 1, 1], [], []>} : vector<5x6xf32>, vector<6x8xf32>, vector<5x8xf32> -> vector<5x8xf32>
    %c0_6 = arith.constant 0 : index
    %c0_7 = arith.constant 0 : index
    %5 = vector.load %arg4[%c0_6, %c0_7] : memref<5x1xf32, #tpu.memory_space<vmem>>, vector<5x1xf32>
    %6 = vector.broadcast %5 : vector<5x1xf32> to vector<5x8xf32>
    %7 = arith.addf %4, %6 : vector<5x8xf32>
    %c0_8 = arith.constant 0 : index
    %c0_9 = arith.constant 0 : index
    %c0_10 = arith.constant 0 : index
    %8 = vector.load %arg5[%c0_8, %c0_9, %c0_10] : memref<1x5x8xf32, #tpu.memory_space<vmem>>, vector<1x5x8xf32>
    %9 = vector.shape_cast %8 : vector<1x5x8xf32> to vector<5x8xf32>
    %10 = vector.shape_cast %7 : vector<5x8xf32> to vector<1x5x8xf32>
    tpu.vector_store %arg5[%c0_8, %c0_9, %c0_10], %10 {strides = array<i32>} : memref<1x5x8xf32, #tpu.memory_space<vmem>>, vector<1x5x8xf32>,
    return
  }
  func.func @transform_0(%arg0: i32, %arg1: i32) -> (i32, i32, i32, i32) {
    %c0_i32 = arith.constant 0 : i32
    %c0_i32_0 = arith.constant 0 : i32
    %c0_i32_1 = arith.constant 0 : i32
    return %arg0, %c0_i32, %arg1, %c0_i32_0 : i32, i32, i32, i32
  }
  func.func @transform_1(%arg0: i32, %arg1: i32) -> (i32, i32) {
    %c0_i32 = arith.constant 0 : i32
    %c0_i32_0 = arith.constant 0 : i32
    %c0_i32_1 = arith.constant 0 : i32
    return %c0_i32, %c0_i32_0 : i32, i32
  }
  func.func @transform_2(%arg0: i32, %arg1: i32) -> (i32, i32) {
    %c0_i32 = arith.constant 0 : i32
    %c0_i32_0 = arith.constant 0 : i32
    %c0_i32_1 = arith.constant 0 : i32
    return %c0_i32, %c0_i32_0 : i32, i32
  }
  func.func @transform_3(%arg0: i32, %arg1: i32) -> (i32, i32, i32) {
    %c0_i32 = arith.constant 0 : i32
    %c0_i32_0 = arith.constant 0 : i32
    return %arg0, %c0_i32, %arg1 : i32, i32, i32
  }
}

</mosaic_0001>

<llo_original>
// kernel: tpu_custom_call.1
$region0: #{tpu_custom_call.1}
  #allocation0 [shape = 'u32[]', space=smem, size = 0x4, offset = 0x4, fixed_abs, tag = 'smem constant byte address 0x4 - core index']
  #allocation1 [shape = 'u32[144,128]{1,0:T(1,128)}', space=vmem, size = 0x12000, scoped, tag = 'internal scratch']
  %s0 = inlined_call_operand.hbm [shape: f32[2,6,8,16], index: 0, kind: input, shape index: {}]
  %s1 = inlined_call_operand.vmem [shape: f32[5,6], index: 1, kind: input, shape index: {}]
  %s2 = inlined_call_operand.vmem [shape: f32[5,1], index: 2, kind: input, shape index: {}]
  %s3 = inlined_call_operand.vmem [shape: f32[2,5,8], index: 3, kind: output, shape index: {}]
  %s4 = sld [smem:[#allocation0]]
  $region49: #{tpu_custom_call.1} parent=0
    _
  %s6 = ssub.s32 1, %s4
  %s7 = scalar_select 0, %s6, %s4
  $region1: #{tpu_custom_call.1} parent=0
    #allocation2 [shape = 'u8[49152]{0}', space=vmem, size = 0xc000, scoped, tag = 'input window, operand 0']
    #allocation3 [shape = 's32[2]{0}', space=sflag, size = 0x8, scoped, tag = 'scoped memory for tpu_custom_call.1']
    %8 = vsyncpa [#allocation3], 0
    %s9 = scalar_lea.sflag [#allocation3], 1
    %10 = vsyncpa %s9, 0
    loop: start=0, step=1, limit=4
    $region2: #{tpu_custom_call.1} parent=1 // loop_pre_header
      _
    $region3: #{tpu_custom_call.1} parent=1 // loop_header
      %s12 = sphi 0, %s16
      %p13 = scmp.ge.s32.totalorder %s12, 4
      %s19 = sphi 0, %s31
      %s20 = sphi 0, %s27
      %s21 = sphi 0, %s19
      %s22 = sphi 0, %s20
      %s23 = sphi 0, %s21
      %s24 = sphi 0, %s22
      %s36 = sphi 0, %s38
      %s39 = sphi 0, %s36
      %s40 = sphi 0, %s39
      %s56 = sphi 0, %s40
      %s60 = sphi 0, %s60
      %s62 = sphi 0, %s60
      %s63 = sphi 0, %s62
      %s77 = sphi 0, %s63
      %s81 = sphi 0, %s81
      %s83 = sphi 0, %s81
      %s84 = sphi 0, %s83
      %s98 = sphi 0, %s84
      %s106 = sphi 0, %s108
      %s109 = sphi 0, %s106
      %s110 = sphi 0, %s109
      %s126 = sphi 0, %s110
    $region4: #{tpu_custom_call.1} parent=1 // loop_header_branch
      %15 = sbr.rel (%p13) target = $region8
    $region5: #{tpu_custom_call.1} parent=1 // loop_body
      %s17 = ssub.s32 %s12, 1
      %s18 = ssub.s32 %s12, 2
      %s25 = sadd.s32 1, %s20
      %p26 = scmp.ge.s32.totalorder %s25, 1
      %s27 = scalar_select %p26, 0, %s25
      %s28 = sadd.s32 1, %s19
      %s29 = scalar_select %p26, %s28, %s19
      %p30 = scmp.ge.s32.totalorder %s29, 2
      %s31 = scalar_select %p30, 0, %s29
      %s32 = ssub.s32 %s19, %s31
      %s33 = ssub.s32 %s20, %s27
      %s34 = sor.u32 %s32, %s33
      %p35 = scmp.eq.s32.totalorder %s34, 0
      %s37 = sadd.s32 %s36, 1
      %s38 = scalar_select %p35, %s36, %s37
      %p41 = pneg %p35
      %p42 = scmp.eq.s32.totalorder %s12, 1
      %p43 = por %p41, %p42
      %p44 = scmp.ne.s32.totalorder %s36, %s39
      %p45 = scmp.eq.s32.totalorder %s12, 0
      %p46 = por %p44, %p45
      %p47 = scmp.ne.s32.totalorder %s36, %s39
      %p48 = scmp.eq.s32.totalorder %s17, 1
      %p49 = por %p47, %p48
      %p50 = scmp.ne.s32.totalorder %s39, %s40
      %p51 = scmp.eq.s32.totalorder %s17, 0
      %p52 = por %p50, %p51
      %p53 = scmp.ne.s32.totalorder %s39, %s40
      %p54 = scmp.eq.s32.totalorder %s18, 1
      %p55 = por %p53, %p54
      %p57 = scmp.ne.s32.totalorder %s40, %s56
      %p58 = scmp.eq.s32.totalorder %s18, 0
      %p59 = por %p57, %p58
      %s61 = sadd.s32 %s60, 1
      %p64 = scmp.eq.s32.totalorder %s12, 1
      %p65 = scmp.ne.s32.totalorder %s60, %s62
      %p66 = scmp.eq.s32.totalorder %s12, 0
      %p67 = por %p65, %p66
      %p68 = scmp.ne.s32.totalorder %s60, %s62
      %p69 = scmp.eq.s32.totalorder %s17, 1
      %p70 = por %p68, %p69
      %p71 = scmp.ne.s32.totalorder %s62, %s63
      %p72 = scmp.eq.s32.totalorder %s17, 0
      %p73 = por %p71, %p72
      %p74 = scmp.ne.s32.totalorder %s62, %s63
      %p75 = scmp.eq.s32.totalorder %s18, 1
      %p76 = por %p74, %p75
      %p78 = scmp.ne.s32.totalorder %s63, %s77
      %p79 = scmp.eq.s32.totalorder %s18, 0
      %p80 = por %p78, %p79
      %s82 = sadd.s32 %s81, 1
      %p85 = scmp.eq.s32.totalorder %s12, 1
      %p86 = scmp.ne.s32.totalorder %s81, %s83
      %p87 = scmp.eq.s32.totalorder %s12, 0
      %p88 = por %p86, %p87
      %p89 = scmp.ne.s32.totalorder %s81, %s83
      %p90 = scmp.eq.s32.totalorder %s17, 1
      %p91 = por %p89, %p90
      %p92 = scmp.ne.s32.totalorder %s83, %s84
      %p93 = scmp.eq.s32.totalorder %s17, 0
      %p94 = por %p92, %p93
      %p95 = scmp.ne.s32.totalorder %s83, %s84
      %p96 = scmp.eq.s32.totalorder %s18, 1
      %p97 = por %p95, %p96
      %p99 = scmp.ne.s32.totalorder %s84, %s98
      %p100 = scmp.eq.s32.totalorder %s18, 0
      %p101 = por %p99, %p100
      %s102 = ssub.s32 %s19, %s31
      %s103 = ssub.s32 %s20, %s27
      %s104 = sor.u32 %s102, %s103
      %p105 = scmp.eq.s32.totalorder %s104, 0
      %s107 = sadd.s32 %s106, 1
      %s108 = scalar_select %p105, %s106, %s107
      %p111 = pneg %p105
      %p112 = scmp.eq.s32.totalorder %s12, 1
      %p113 = por %p111, %p112
      %p114 = scmp.ne.s32.totalorder %s106, %s109
      %p115 = scmp.eq.s32.totalorder %s12, 0
      %p116 = por %p114, %p115
      %p117 = scmp.ne.s32.totalorder %s106, %s109
      %p118 = scmp.eq.s32.totalorder %s17, 1
      %p119 = por %p117, %p118
      %p120 = scmp.ne.s32.totalorder %s109, %s110
      %p121 = scmp.eq.s32.totalorder %s17, 0
      %p122 = por %p120, %p121
      %p123 = scmp.ne.s32.totalorder %s109, %s110
      %p124 = scmp.eq.s32.totalorder %s18, 1
      %p125 = por %p123, %p124
      %p127 = scmp.ne.s32.totalorder %s110, %s126
      %p128 = scmp.eq.s32.totalorder %s18, 0
      %p129 = por %p127, %p128
      %p130 = scmp.le.s32.totalorder 1, %s12
      %p131 = scmp.lt.s32.totalorder %s12, 3
      %p132 = pnand %p130, %p131
      %p133 = pneg %p132
      // Predicated region
      $region9: #{tpu_custom_call.1} parent=5 // pred_check
        _
      $region10: #{tpu_custom_call.1} parent=5 // pred_check_branch
        %135 = sbr.rel (%p132) target = $region12
      $region11: #{tpu_custom_call.1} parent=5 // pred_region
        %s136 = ssub.s32 %s12, 1
        // Predicated region
        $region13: #{tpu_custom_call.1} parent=11 // pred_check
          %p137 = pneg %p73
        $region14: #{tpu_custom_call.1} parent=11 // pred_check_branch
          %139 = sbr.rel (%p137) target = $region16
        $region15: #{tpu_custom_call.1} parent=11 // pred_region
          _
        $region16: #{tpu_custom_call.1} parent=11 // pred_fallthru
          _
        // Predicated region
        $region17: #{tpu_custom_call.1} parent=11 // pred_check
          %p140 = pneg %p94
        $region18: #{tpu_custom_call.1} parent=11 // pred_check_branch
          %142 = sbr.rel (%p140) target = $region20
        $region19: #{tpu_custom_call.1} parent=11 // pred_region
          _
        $region20: #{tpu_custom_call.1} parent=11 // pred_fallthru
          _
      $region12: #{tpu_custom_call.1} parent=5 // pred_fallthru
        _
      %p143 = scmp.lt.s32.totalorder %s12, 2
      // Predicated region
      $region21: #{tpu_custom_call.1} parent=5 // pred_check
        %p144 = pneg %p143
      $region22: #{tpu_custom_call.1} parent=5 // pred_check_branch
        %146 = sbr.rel (%p144) target = $region24
      $region23: #{tpu_custom_call.1} parent=5 // pred_region
        // Predicated region
        $region25: #{tpu_custom_call.1} parent=23 // pred_check
          %p147 = pneg %p46
        $region26: #{tpu_custom_call.1} parent=23 // pred_check_branch
          %149 = sbr.rel (%p147) target = $region28
        $region27: #{tpu_custom_call.1} parent=23 // pred_region
          %s150 = sand.u32 %s36, 1
          %s151 = scalar_lea.sflag [#allocation3], %s150
          %s152 = sand.u32 %s36, 1
          %s153 = smul.addr %s152, 48
          %s154 = scalar_lea.vmem [#allocation2], %s153
          %s156 = ssub.s32 768, 768
          %157 = vsyncadd %s151, %s156
          %s158 = smul.addr %s19, 6
          %s159 = sadd.s32 %s20, %s158
          %s160 = smul.addr %s159, 128
          %s161 = scalar_lea.hbm %s0, %s160
          %s162 = sshll.u32 %s154, 4
          %s163 = int_to_ptr.vmem [resolvable:$true] %s162
          %168 = dma.hbm_to_vmem [thread:$0]  %s161, 768, %s163, %s151, 128, 128, 8
        $region28: #{tpu_custom_call.1} parent=23 // pred_fallthru
          _
      $region24: #{tpu_custom_call.1} parent=5 // pred_fallthru
        _
      %p169 = scmp.le.s32.totalorder 1, %s12
      %p170 = scmp.lt.s32.totalorder %s12, 3
      %p171 = pnand %p169, %p170
      %p172 = pneg %p171
      // Predicated region
      $region29: #{tpu_custom_call.1} parent=5 // pred_check
        _
      $region30: #{tpu_custom_call.1} parent=5 // pred_check_branch
        %174 = sbr.rel (%p171) target = $region32
      $region31: #{tpu_custom_call.1} parent=5 // pred_region
        %s175 = ssub.s32 %s12, 1
        %s176 = sand.u32 %s39, 1
        %s177 = scalar_lea.sflag [#allocation3], %s176
        %s178 = sand.u32 %s39, 1
        %s179 = smul.addr %s178, 48
        %s180 = scalar_lea.vmem [#allocation2], %s179
        // Predicated region
        $region33: #{tpu_custom_call.1} parent=31 // pred_check
          %p181 = pneg %p52
        $region34: #{tpu_custom_call.1} parent=31 // pred_check_branch
          %183 = sbr.rel (%p181) target = $region36
        $region35: #{tpu_custom_call.1} parent=31 // pred_region
          %184 = dma.done %s177, 768
        $region36: #{tpu_custom_call.1} parent=31 // pred_fallthru
          _
        %s185 = sand.u32 %s39, 1
        %s186 = scalar_lea.sflag [#allocation3], %s185
        %s187 = sand.u32 %s39, 1
        %s188 = smul.addr %s187, 48
        %s189 = scalar_lea.vmem [#allocation2], %s188
        %p190 = pneg %p52
        %p191 = pneg %p49
        %p192 = pneg %p73
        %p193 = pneg %p70
        %p194 = pneg %p94
        %p195 = pneg %p91
        %p196 = pneg %p122
        %p197 = pneg %p119
        %p198 = scmp.lt.s32.totalorder %s21, 1
        %s199 = scalar_select %p198, %s21, 1
        %p200 = scmp.lt.s32.totalorder %s22, 0
        %s201 = scalar_select %p200, %s22, 0
        %s202 = sadd.s32 %s201, %s199
        %s203 = smul.addr %s202, 8
        %s204 = scalar_lea.vmem %s3, %s203
        %p205 = scmp.lt.s32.totalorder %s21, 1
        %s206 = scalar_select %p205, %s21, 1
        %p207 = scmp.lt.s32.totalorder %s22, 0
        %s208 = scalar_select %p207, %s22, 0
        %s209 = sadd.s32 %s208, %s206
        %s210 = smul.addr %s209, 8
        %s211 = scalar_lea.vmem %s3, %s210
        %v212 = vld [vmem:[%s180] sm:$0xff]
        %v213 = vld [vmem:[%s180 + $0x8] sm:$0xff]
        %v214 = vld [vmem:[%s180 + $0x10] sm:$0xff]
        %v215 = vld [vmem:[%s180 + $0x18] sm:$0xff]
        %v216 = vld [vmem:[%s180 + $0x20] sm:$0xff]
        %v217 = vld [vmem:[%s180 + $0x28] sm:$0xff]
        %vm218 = vcmask 130048
        %v219 = vsel %vm218, %v212, 0.0
        %220 = vadd.xlane.f32.xlu0 %v219
        %v221 = vpop.xlane.xlu0 %220
        %v222 = vsel %vm218, %v213, 0.0
        %223 = vadd.xlane.f32.xlu0 %v222
        %v224 = vpop.xlane.xlu0 %223
        %v225 = vsel %vm218, %v214, 0.0
        %226 = vadd.xlane.f32.xlu0 %v225
        %v227 = vpop.xlane.xlu0 %226
        %v228 = vsel %vm218, %v215, 0.0
        %229 = vadd.xlane.f32.xlu0 %v228
        %v230 = vpop.xlane.xlu0 %229
        %v231 = vsel %vm218, %v216, 0.0
        %232 = vadd.xlane.f32.xlu0 %v231
        %v233 = vpop.xlane.xlu0 %232
        %v234 = vsel %vm218, %v217, 0.0
        %235 = vadd.xlane.f32.xlu0 %v234
        %v236 = vpop.xlane.xlu0 %235
        %v237 = vld [vmem:[%s1] sm:$0x1f]
        %v238 = vld [vmem:[%s2] sm:$0x1f]
        %240 = vset.pattern.permute.xlu0 0
        %241 = vperm.xlu0 %240, %v238
        %v242 = vpop.permute.xlu0 %241
        %v250 = vlaneseq
        %v251 = vand.u32 %v250, 127
        %v252 = vlaneseq
        %v253 = vshrl.u32 %v252, 7
        %v254 = vsub.s32 %v251, %v253
        %v255 = vrot.slane %v221, %v254
        %v256 = vlaneseq
        %v257 = vshrl.u32 %v256, 7
        %v258 = vsub.s32 %v251, %v257
        %v259 = vrot.slane %v224, %v258
        %v260 = vlaneseq
        %v261 = vshrl.u32 %v260, 7
        %v262 = vsub.s32 %v251, %v261
        %v263 = vrot.slane %v227, %v262
        %v264 = vlaneseq
        %v265 = vshrl.u32 %v264, 7
        %v266 = vsub.s32 %v251, %v265
        %v267 = vrot.slane %v230, %v266
        %v268 = vlaneseq
        %v269 = vshrl.u32 %v268, 7
        %v270 = vsub.s32 %v251, %v269
        %v271 = vrot.slane %v233, %v270
        %v272 = vlaneseq
        %v273 = vshrl.u32 %v272, 7
        %v274 = vsub.s32 %v251, %v273
        %v275 = vrot.slane %v236, %v274
        %vm276 = vcmask 1041409
        %v277 = vsel %vm276, %v259, %v255
        %vm278 = vcmask 1042434
        %v279 = vsel %vm278, %v263, %v277
        %vm280 = vcmask 1043459
        %v281 = vsel %vm280, %v267, %v279
        %vm282 = vcmask 1044484
        %v283 = vsel %vm282, %v271, %v281
        %vm284 = vcmask 1045509
        %v285 = vsel %vm284, %v275, %v283
        %vm286 = vcmask 48128
        %v288 = vsel %vm286, %v237, 0
        %vm290 = vcmask 1045504
        %v291 = vsel %vm290, %v285, 0
        %293 = vmatprep.subr.mxu0 0.0
        %294 = vmatpush1.msra.mxu0 %v291
        %295 = vmatprep.subr.mxu0 0.0
        %296 = vmatpush1.msra.mxu0 0.0
        %297 = vmatprep.subr.mxu0 0.0
        %298 = vmatpush1.msra.mxu0 0.0
        %299 = vmatprep.subr.mxu0 0.0
        %300 = vmatpush1.msra.mxu0 0.0
        %301 = vmatprep.subr.mxu0 0.0
        %302 = vmatpush1.msra.mxu0 0.0
        %303 = vmatprep.subr.mxu0 0.0
        %304 = vmatpush1.msra.mxu0 0.0
        %305 = vmatprep.subr.mxu0 0.0
        %306 = vmatpush1.msra.mxu0 0.0
        %307 = vmatprep.subr.mxu0 0.0
        %308 = vmatpush1.msra.mxu0 0.0
        %309 = vmatprep.subr.mxu0 0.0
        %310 = vmatpush1.msra.mxu0 0.0
        %311 = vmatprep.subr.mxu0 0.0
        %312 = vmatpush1.msra.mxu0 0.0
        %313 = vmatprep.subr.mxu0 0.0
        %314 = vmatpush1.msra.mxu0 0.0
        %315 = vmatprep.subr.mxu0 0.0
        %316 = vmatpush1.msra.mxu0 0.0
        %317 = vmatprep.subr.mxu0 0.0
        %318 = vmatpush1.msra.mxu0 0.0
        %319 = vmatprep.subr.mxu0 0.0
        %320 = vmatpush1.msra.mxu0 0.0
        %321 = vmatprep.subr.mxu0 0.0
        %322 = vmatpush1.msra.mxu0 0.0
        %323 = vmatprep.subr.mxu0 0.0
        %324 = vmatpush1.msra.mxu0 0.0
        %325 = vmatprep.subr.mxu0 0.0
        %326 = vmatpush1.msra.mxu0 0.0
        %327 = vmatprep.subr.mxu0 0.0
        %328 = vmatpush1.msra.mxu0 0.0
        %329 = vmatprep.subr.mxu0 0.0
        %330 = vmatpush1.msra.mxu0 0.0
        %331 = vmatprep.subr.mxu0 0.0
        %332 = vmatpush1.msra.mxu0 0.0
        %333 = vmatprep.subr.mxu0 0.0
        %334 = vmatpush1.msra.mxu0 0.0
        %335 = vmatprep.subr.mxu0 0.0
        %336 = vmatpush1.msra.mxu0 0.0
        %337 = vmatprep.subr.mxu0 0.0
        %338 = vmatpush1.msra.mxu0 0.0
        %339 = vmatprep.subr.mxu0 0.0
        %340 = vmatpush1.msra.mxu0 0.0
        %341 = vmatprep.subr.mxu0 0.0
        %342 = vmatpush1.msra.mxu0 0.0
        %343 = vmatprep.subr.mxu0 0.0
        %344 = vmatpush1.msra.mxu0 0.0
        %345 = vmatprep.subr.mxu0 0.0
        %346 = vmatpush1.msra.mxu0 0.0
        %347 = vmatprep.subr.mxu0 0.0
        %348 = vmatpush1.msra.mxu0 0.0
        %349 = vmatprep.subr.mxu0 0.0
        %350 = vmatpush1.msra.mxu0 0.0
        %351 = vmatprep.subr.mxu0 0.0
        %352 = vmatpush1.msra.mxu0 0.0
        %353 = vmatprep.subr.mxu0 0.0
        %354 = vmatpush1.msra.mxu0 0.0
        %355 = vmatprep.subr.mxu0 0.0
        %356 = vmatpush1.msra.mxu0 0.0
        %357 = vmatprep.mubr.f32.mxu0 0.0
        %358 = vmatmul.mubr.f32.gmra.mrb[0].mxu0 %v288
        %v359 = vpop.f32.mrb[0].mxu0
        %v360 = vadd.f32 %v242, %v359
        %v361 = vpop.f32.mrb[0].mxu0
        %362 = vdwg.mxu0
        %vm363 = vcmask 61440
        %364 = vst.msk [vmem:[%s211] sm:$0x1f] %vm363, %v360
        %p365 = scmp.lt.s32.totalorder %s21, 1
        %s366 = scalar_select %p365, %s21, 1
        %p367 = scmp.lt.s32.totalorder %s22, 0
        %s368 = scalar_select %p367, %s22, 0
        %s369 = sadd.s32 %s368, %s366
        %s370 = smul.addr %s369, 8
        %s371 = scalar_lea.vmem %s3, %s370
        // Predicated region
        $region37: #{tpu_custom_call.1} parent=31 // pred_check
          %p372 = pneg %p119
        $region38: #{tpu_custom_call.1} parent=31 // pred_check_branch
          %374 = sbr.rel (%p372) target = $region40
        $region39: #{tpu_custom_call.1} parent=31 // pred_region
          _
        $region40: #{tpu_custom_call.1} parent=31 // pred_fallthru
          _
      $region32: #{tpu_custom_call.1} parent=5 // pred_fallthru
        _
      %p375 = scmp.le.s32.totalorder 2, %s12
      // Predicated region
      $region41: #{tpu_custom_call.1} parent=5 // pred_check
        %p376 = pneg %p375
      $region42: #{tpu_custom_call.1} parent=5 // pred_check_branch
        %378 = sbr.rel (%p376) target = $region44
      $region43: #{tpu_custom_call.1} parent=5 // pred_region
        %s379 = ssub.s32 %s12, 2
        // Predicated region
        $region45: #{tpu_custom_call.1} parent=43 // pred_check
          %p380 = pneg %p125
        $region46: #{tpu_custom_call.1} parent=43 // pred_check_branch
          %382 = sbr.rel (%p380) target = $region48
        $region47: #{tpu_custom_call.1} parent=43 // pred_region
          %p383 = scmp.lt.s32.totalorder %s23, 1
          %s384 = scalar_select %p383, %s23, 1
          %p385 = scmp.lt.s32.totalorder %s24, 0
          %s386 = scalar_select %p385, %s24, 0
          %s387 = sadd.s32 %s386, %s384
          %s388 = smul.addr %s387, 8
          %s389 = scalar_lea.vmem %s3, %s388
        $region48: #{tpu_custom_call.1} parent=43 // pred_fallthru
          _
      $region44: #{tpu_custom_call.1} parent=5 // pred_fallthru
        _
    $region6: #{tpu_custom_call.1} parent=1 // loop_footer
      %s16 = sadd.s32 1, %s12
    $region7: #{tpu_custom_call.1} parent=1 // loop_footer_branch
      %11 = sbr.rel target = $region3
    $region8: #{tpu_custom_call.1} parent=1 // loop_exit
      _
    %390 = vsyncpa [#allocation3], 1
    %s391 = scalar_lea.sflag [#allocation3], 1
    %392 = vsyncpa %s391, 1

</llo_original>
